<compile_context>
chip_gen: v7x
topology: tpu7x:2x2x1
jax: 0.10.0
libtpu: 0.0.40
codegen_flags: <defaults>
</compile_context>

<pallas_src>
import jax
import jax.numpy as jnp
from jax.experimental import pallas as pl
from jax.experimental.pallas import tpu as pltpu

_VMEM = pl.BlockSpec(memory_space=pltpu.MemorySpace.VMEM)
_OUT_PAD = 128  # lane-dense width for the final (1, 4) output and packed biases


# ----------------------------------------------------------------------------
# Fused Pallas kernel: GCN stack + global max pool + decoder
# ----------------------------------------------------------------------------
def _make_fused_kernel(n, f, h, depth):
    def kernel(a_ref, x_ref, wi_ref, wh_ref, w1_ref, w2_ref, b_ref, o_ref):
        a = a_ref[...]                                                   # (N, N) bf16

        # conv_i: relu(A_norm @ X @ W_i + b_i); contract as (A @ X) @ W_i (F < H).
        ax = jnp.dot(a, x_ref[...], preferred_element_type=jnp.float32)  # (N, F) f32
        z = jnp.dot(ax.astype(jnp.bfloat16), wi_ref[...],
                    preferred_element_type=jnp.float32)                  # (N, H) f32
        act = jnp.maximum(z + b_ref[0:1, :h], 0.0)                       # (N, H) f32

        # depth hidden GCN layers, statically unrolled; activation stays in vregs.
        for d in range(depth):
            xw = jnp.dot(act.astype(jnp.bfloat16), wh_ref[d],
                         preferred_element_type=jnp.float32)             # (N, H) f32
            hh = jnp.dot(a, xw.astype(jnp.bfloat16),
                         preferred_element_type=jnp.float32)             # (N, H) f32
            act = jnp.maximum(hh + b_ref[1 + d:2 + d, :h], 0.0)

        # global_max_pool over all nodes (batch=None -> single graph), then decoder.
        zp = jnp.max(act, axis=0, keepdims=True)                             # (1, H)
        h1 = jnp.dot(zp, w1_ref[...], preferred_element_type=jnp.float32)    # (1, H/2)
        h1 = jnp.maximum(h1 + b_ref[depth + 1:depth + 2, :h // 2], 0.0)
        out = jnp.dot(h1, w2_ref[...], preferred_element_type=jnp.float32)   # (1, 128)
        o_ref[...] = out + b_ref[depth + 2:depth + 3, :]                     # lane-dense

    return kernel


def fused_forward(a_norm, x, params):
    n, f = x.shape
    h = params["wi"].shape[1]
    depth = params["wh"].shape[0]
    kernel = _make_fused_kernel(n, f, h, depth)
    out = pl.pallas_call(
        kernel,
        out_shape=jax.ShapeDtypeStruct((1, _OUT_PAD), jnp.float32),
        in_specs=[_VMEM] * 7,
        out_specs=_VMEM,
    )(
        a_norm.astype(jnp.bfloat16),
        x.astype(jnp.bfloat16),
        params["wi"],
        params["wh"],
        params["w1"],
        params["w2"],
        params["bias"],
    )
    return out[:, :4]                                                    # (1, 4)


# ----------------------------------------------------------------------------
# Glue: GCN normalized adjacency (matches torch_geometric GCNConv's gcn_norm)
# ----------------------------------------------------------------------------
def build_norm_adj(edge_index, num_nodes):
    src = edge_index[0]
    dst = edge_index[1]
    a = jnp.zeros((num_nodes, num_nodes), jnp.float32)
    a = a.at[dst, src].add(1.0)                           # A[target, source] = 1
    a = a + jnp.eye(num_nodes, dtype=jnp.float32)         # add self loops
    deg = jnp.sum(a, axis=1)                              # degree incl. self loop
    dinv = jax.lax.rsqrt(jnp.where(deg > 0, deg, 1.0))
    return dinv[:, None] * a * dinv[None, :]              # D^-1/2 (A+I) D^-1/2


# ----------------------------------------------------------------------------
# Model: parameter construction (packed into the fused-kernel layout) + forward
# ----------------------------------------------------------------------------
def init_params(key, n_node_features, hiddens, depth):
    def glorot(k, shape):
        fan_in, fan_out = shape
        scale = jnp.sqrt(2.0 / (fan_in + fan_out))
        return scale * jax.random.normal(k, shape, jnp.float32)

    keys = jax.random.split(key, depth + 3)
    wi = glorot(keys[0], (n_node_features, hiddens))
    wh = jnp.stack([glorot(keys[1 + d], (hiddens, hiddens)) for d in range(depth)])
    w1 = glorot(keys[depth + 1], (hiddens, hiddens // 2))
    w2 = glorot(keys[depth + 2], (hiddens // 2, 4))

    # Biases (zero at init), packed into one lane-padded (depth+3, 128) array:
    #   row 0          : conv_i bias            (width H)
    #   rows 1..depth  : hidden GCN biases      (width H)
    #   row depth+1    : decoder layer-1 bias   (width H/2)
    #   row depth+2    : decoder layer-2 bias   (width 4)
    bias = jnp.zeros((depth + 3, _OUT_PAD), jnp.float32)
    bias = bias.at[0, :hiddens].set(jnp.zeros((hiddens,), jnp.float32))
    bias = bias.at[1:1 + depth, :hiddens].set(jnp.zeros((depth, hiddens), jnp.float32))
    bias = bias.at[1 + depth, :hiddens // 2].set(jnp.zeros((hiddens // 2,), jnp.float32))
    bias = bias.at[2 + depth, :4].set(jnp.zeros((4,), jnp.float32))

    # Zero-pad w2 to lane width 128 so the final store is lane-dense.
    w2_pad = jnp.zeros((hiddens // 2, _OUT_PAD), jnp.float32).at[:, :4].set(w2)

    return {
        "wi": wi.astype(jnp.bfloat16),      # (F, H)         bf16 MXU operand
        "wh": wh.astype(jnp.bfloat16),      # (depth, H, H)  bf16 MXU operand
        "w1": w1,                           # (H, H/2)       f32 decoder
        "w2": w2_pad,                       # (H/2, 128)     f32 decoder (padded)
        "bias": bias,                       # (depth+3, 128) f32 packed biases
    }


@jax.jit
def _forward(params, x, edge_index, edge_attr):
    a_norm = build_norm_adj(edge_index, x.shape[0])
    probs = fused_forward(a_norm, x, params)
    return probs, edge_attr


def simple_graph_centered_net(params, x, edge_index, edge_attr, u=None, batch=None):
    # batch=None -> all nodes belong to graph 0 (single graph), as in the module.
    # TODO(synk): multi-graph batching (batch != None) would add a graph grid axis.
    probs, edge_attr = _forward(params, x, edge_index, edge_attr)
    return probs, edge_attr, u


# ----------------------------------------------------------------------------
if __name__ == "__main__":
    key = jax.random.PRNGKey(0)
    k_param, k_x, k_e = jax.random.split(key, 3)

    # Small synthetic graph: 16 nodes, ring topology (undirected), 4 node feats.
    N = 16
    N_NODE_FEATURES = 4
    N_EDGE_FEATURES = 3
    HIDDENS = 32
    DEPTH = 4

    nxt = (jnp.arange(N) + 1) % N
    src = jnp.concatenate([jnp.arange(N), nxt])
    dst = jnp.concatenate([nxt, jnp.arange(N)])
    edge_index = jnp.stack([src, dst]).astype(jnp.int32)          # (2, 2N)

    x = jax.random.normal(k_x, (N, N_NODE_FEATURES), jnp.float32)
    edge_attr = jax.random.normal(k_e, (2 * N, N_EDGE_FEATURES), jnp.float32)

    params = init_params(k_param, N_NODE_FEATURES, HIDDENS, DEPTH)

    probs, edge_attr_out, u_out = simple_graph_centered_net(
        params, x, edge_index, edge_attr, u=None, batch=None)
    jax.block_until_ready(probs)

    assert probs.shape == (1, 4)
    assert edge_attr_out.shape == edge_attr.shape
    assert u_out is None
    print("KERNEL_OK")
</pallas_src>

<mosaic_0001>
module attributes {stable_mosaic.version = 11 : i64} {
  func.func private @main(%arg0: i32) attributes {dimension_semantics = [#tpu.dimension_semantics<core_parallel>], iteration_bounds = array<i64: 2>, tpu.core_type = #tpu.core_type<sc_scalar_subcore>, window_params = []} {
    return
  }
}

module attributes {stable_mosaic.version = 11 : i64} {
  func.func private @main(%arg0: i32) attributes {dimension_semantics = [#tpu.dimension_semantics<core_parallel>], iteration_bounds = array<i64: 2>, tpu.core_type = #tpu.core_type<sc_scalar_subcore>, window_params = []} {
    return
  }
}

module attributes {stable_mosaic.version = 11 : i64} {
  func.func @kernel(%arg0: memref<16x16xbf16, #tpu.memory_space<vmem>>, %arg1: memref<16x4xbf16, #tpu.memory_space<vmem>>, %arg2: memref<4x32xbf16, #tpu.memory_space<vmem>>, %arg3: memref<4x32x32xbf16, #tpu.memory_space<vmem>>, %arg4: memref<32x16xf32, #tpu.memory_space<vmem>>, %arg5: memref<16x128xf32, #tpu.memory_space<vmem>>, %arg6: memref<7x128xf32, #tpu.memory_space<vmem>>, %arg7: memref<1x128xf32, #tpu.memory_space<vmem>>) attributes {dimension_semantics = [], scalar_prefetch = 0 : i64, scratch_operands = 0 : i64, tpu.core_type = #tpu.core_type<tc>} {
    %c0 = arith.constant 0 : index
    %c0_0 = arith.constant 0 : index
    %0 = vector.load %arg0[%c0, %c0_0] : memref<16x16xbf16, #tpu.memory_space<vmem>>, vector<16x16xbf16>
    %c0_1 = arith.constant 0 : index
    %c0_2 = arith.constant 0 : index
    %1 = vector.load %arg1[%c0_1, %c0_2] : memref<16x4xbf16, #tpu.memory_space<vmem>>, vector<16x4xbf16>
    %cst = arith.constant dense<0.000000e+00> : vector<16x4xf32>
    %2 = tpu.matmul %0, %1, %cst {dimension_numbers = #tpu.dot_dimension_numbers<[1], [0], [0], [1], [0, 0, 1, 1], [], []>} : vector<16x16xbf16>, vector<16x4xbf16>, vector<16x4xf32> -> vector<16x4xf32>
    %3 = arith.truncf %2 : vector<16x4xf32> to vector<16x4xbf16>
    %c0_3 = arith.constant 0 : index
    %c0_4 = arith.constant 0 : index
    %4 = vector.load %arg2[%c0_3, %c0_4] : memref<4x32xbf16, #tpu.memory_space<vmem>>, vector<4x32xbf16>
    %cst_5 = arith.constant dense<0.000000e+00> : vector<16x32xf32>
    %5 = tpu.matmul %3, %4, %cst_5 {dimension_numbers = #tpu.dot_dimension_numbers<[1], [0], [0], [1], [0, 0, 1, 1], [], []>} : vector<16x4xbf16>, vector<4x32xbf16>, vector<16x32xf32> -> vector<16x32xf32>
    %c0_6 = arith.constant 0 : index
    %c0_7 = arith.constant 0 : index
    %6 = vector.load %arg6[%c0_6, %c0_7] : memref<7x128xf32, #tpu.memory_space<vmem>>, vector<1x32xf32>
    %7 = vector.broadcast %6 : vector<1x32xf32> to vector<16x32xf32>
    %8 = arith.addf %5, %7 : vector<16x32xf32>
    %cst_8 = arith.constant 0.000000e+00 : f32
    %9 = vector.broadcast %cst_8 : f32 to vector<16x32xf32>
    %10 = arith.maximumf %8, %9 : vector<16x32xf32>
    %11 = arith.truncf %10 : vector<16x32xf32> to vector<16x32xbf16>
    %c0_9 = arith.constant 0 : index
    %c0_10 = arith.constant 0 : index
    %c0_11 = arith.constant 0 : index
    %12 = vector.load %arg3[%c0_9, %c0_10, %c0_11] : memref<4x32x32xbf16, #tpu.memory_space<vmem>>, vector<1x32x32xbf16>
    %13 = vector.shape_cast %12 : vector<1x32x32xbf16> to vector<32x32xbf16>
    %cst_12 = arith.constant dense<0.000000e+00> : vector<16x32xf32>
    %14 = tpu.matmul %11, %13, %cst_12 {dimension_numbers = #tpu.dot_dimension_numbers<[1], [0], [0], [1], [0, 0, 1, 1], [], []>} : vector<16x32xbf16>, vector<32x32xbf16>, vector<16x32xf32> -> vector<16x32xf32>
    %15 = arith.truncf %14 : vector<16x32xf32> to vector<16x32xbf16>
    %cst_13 = arith.constant dense<0.000000e+00> : vector<16x32xf32>
    %16 = tpu.matmul %0, %15, %cst_13 {dimension_numbers = #tpu.dot_dimension_numbers<[1], [0], [0], [1], [0, 0, 1, 1], [], []>} : vector<16x16xbf16>, vector<16x32xbf16>, vector<16x32xf32> -> vector<16x32xf32>
    %c1 = arith.constant 1 : index
    %c0_14 = arith.constant 0 : index
    %17 = vector.load %arg6[%c1, %c0_14] : memref<7x128xf32, #tpu.memory_space<vmem>>, vector<1x32xf32>
    %18 = vector.broadcast %17 : vector<1x32xf32> to vector<16x32xf32>
    %19 = arith.addf %16, %18 : vector<16x32xf32>
    %cst_15 = arith.constant 0.000000e+00 : f32
    %20 = vector.broadcast %cst_15 : f32 to vector<16x32xf32>
    %21 = arith.maximumf %19, %20 : vector<16x32xf32>
    %22 = arith.truncf %21 : vector<16x32xf32> to vector<16x32xbf16>
    %c1_16 = arith.constant 1 : index
    %c0_17 = arith.constant 0 : index
    %c0_18 = arith.constant 0 : index
    %23 = vector.load %arg3[%c1_16, %c0_17, %c0_18] : memref<4x32x32xbf16, #tpu.memory_space<vmem>>, vector<1x32x32xbf16>
    %24 = vector.shape_cast %23 : vector<1x32x32xbf16> to vector<32x32xbf16>
    %cst_19 = arith.constant dense<0.000000e+00> : vector<16x32xf32>
    %25 = tpu.matmul %22, %24, %cst_19 {dimension_numbers = #tpu.dot_dimension_numbers<[1], [0], [0], [1], [0, 0, 1, 1], [], []>} : vector<16x32xbf16>, vector<32x32xbf16>, vector<16x32xf32> -> vector<16x32xf32>
    %26 = arith.truncf %25 : vector<16x32xf32> to vector<16x32xbf16>
    %cst_20 = arith.constant dense<0.000000e+00> : vector<16x32xf32>
    %27 = tpu.matmul %0, %26, %cst_20 {dimension_numbers = #tpu.dot_dimension_numbers<[1], [0], [0], [1], [0, 0, 1, 1], [], []>} : vector<16x16xbf16>, vector<16x32xbf16>, vector<16x32xf32> -> vector<16x32xf32>
    %c2 = arith.constant 2 : index
    %c0_21 = arith.constant 0 : index
    %28 = vector.load %arg6[%c2, %c0_21] : memref<7x128xf32, #tpu.memory_space<vmem>>, vector<1x32xf32>
    %29 = vector.broadcast %28 : vector<1x32xf32> to vector<16x32xf32>
    %30 = arith.addf %27, %29 : vector<16x32xf32>
    %cst_22 = arith.constant 0.000000e+00 : f32
    %31 = vector.broadcast %cst_22 : f32 to vector<16x32xf32>
    %32 = arith.maximumf %30, %31 : vector<16x32xf32>
    %33 = arith.truncf %32 : vector<16x32xf32> to vector<16x32xbf16>
    %c2_23 = arith.constant 2 : index
    %c0_24 = arith.constant 0 : index
    %c0_25 = arith.constant 0 : index
    %34 = vector.load %arg3[%c2_23, %c0_24, %c0_25] : memref<4x32x32xbf16, #tpu.memory_space<vmem>>, vector<1x32x32xbf16>
    %35 = vector.shape_cast %34 : vector<1x32x32xbf16> to vector<32x32xbf16>
    %cst_26 = arith.constant dense<0.000000e+00> : vector<16x32xf32>
    %36 = tpu.matmul %33, %35, %cst_26 {dimension_numbers = #tpu.dot_dimension_numbers<[1], [0], [0], [1], [0, 0, 1, 1], [], []>} : vector<16x32xbf16>, vector<32x32xbf16>, vector<16x32xf32> -> vector<16x32xf32>
    %37 = arith.truncf %36 : vector<16x32xf32> to vector<16x32xbf16>
    %cst_27 = arith.constant dense<0.000000e+00> : vector<16x32xf32>
    %38 = tpu.matmul %0, %37, %cst_27 {dimension_numbers = #tpu.dot_dimension_numbers<[1], [0], [0], [1], [0, 0, 1, 1], [], []>} : vector<16x16xbf16>, vector<16x32xbf16>, vector<16x32xf32> -> vector<16x32xf32>
    %c3 = arith.constant 3 : index
    %c0_28 = arith.constant 0 : index
    %39 = vector.load %arg6[%c3, %c0_28] : memref<7x128xf32, #tpu.memory_space<vmem>>, vector<1x32xf32>
    %40 = vector.broadcast %39 : vector<1x32xf32> to vector<16x32xf32>
    %41 = arith.addf %38, %40 : vector<16x32xf32>
    %cst_29 = arith.constant 0.000000e+00 : f32
    %42 = vector.broadcast %cst_29 : f32 to vector<16x32xf32>
    %43 = arith.maximumf %41, %42 : vector<16x32xf32>
    %44 = arith.truncf %43 : vector<16x32xf32> to vector<16x32xbf16>
    %c3_30 = arith.constant 3 : index
    %c0_31 = arith.constant 0 : index
    %c0_32 = arith.constant 0 : index
    %45 = vector.load %arg3[%c3_30, %c0_31, %c0_32] : memref<4x32x32xbf16, #tpu.memory_space<vmem>>, vector<1x32x32xbf16>
    %46 = vector.shape_cast %45 : vector<1x32x32xbf16> to vector<32x32xbf16>
    %cst_33 = arith.constant dense<0.000000e+00> : vector<16x32xf32>
    %47 = tpu.matmul %44, %46, %cst_33 {dimension_numbers = #tpu.dot_dimension_numbers<[1], [0], [0], [1], [0, 0, 1, 1], [], []>} : vector<16x32xbf16>, vector<32x32xbf16>, vector<16x32xf32> -> vector<16x32xf32>
    %48 = arith.truncf %47 : vector<16x32xf32> to vector<16x32xbf16>
    %cst_34 = arith.constant dense<0.000000e+00> : vector<16x32xf32>
    %49 = tpu.matmul %0, %48, %cst_34 {dimension_numbers = #tpu.dot_dimension_numbers<[1], [0], [0], [1], [0, 0, 1, 1], [], []>} : vector<16x16xbf16>, vector<16x32xbf16>, vector<16x32xf32> -> vector<16x32xf32>
    %c4 = arith.constant 4 : index
    %c0_35 = arith.constant 0 : index
    %50 = vector.load %arg6[%c4, %c0_35] : memref<7x128xf32, #tpu.memory_space<vmem>>, vector<1x32xf32>
    %51 = vector.broadcast %50 : vector<1x32xf32> to vector<16x32xf32>
    %52 = arith.addf %49, %51 : vector<16x32xf32>
    %cst_36 = arith.constant 0.000000e+00 : f32
    %53 = vector.broadcast %cst_36 : f32 to vector<16x32xf32>
    %54 = arith.maximumf %52, %53 : vector<16x32xf32>
    %cst_37 = arith.constant dense<0xFF800000> : vector<32xf32>
    %55 = vector.multi_reduction <maximumf>, %54, %cst_37 [0] : vector<16x32xf32> to vector<32xf32>
    %56 = vector.shape_cast %55 : vector<32xf32> to vector<1x32xf32>
    %c0_38 = arith.constant 0 : index
    %c0_39 = arith.constant 0 : index
    %57 = vector.load %arg4[%c0_38, %c0_39] : memref<32x16xf32, #tpu.memory_space<vmem>>, vector<32x16xf32>
    %cst_40 = arith.constant dense<0.000000e+00> : vector<1x16xf32>
    %58 = tpu.matmul %56, %57, %cst_40 {dimension_numbers = #tpu.dot_dimension_numbers<[1], [0], [0], [1], [0, 0, 1, 1], [], []>} : vector<1x32xf32>, vector<32x16xf32>, vector<1x16xf32> -> vector<1x16xf32>
    %c5 = arith.constant 5 : index
    %c0_41 = arith.constant 0 : index
    %59 = vector.load %arg6[%c5, %c0_41] : memref<7x128xf32, #tpu.memory_space<vmem>>, vector<1x16xf32>
    %60 = arith.addf %58, %59 : vector<1x16xf32>
    %cst_42 = arith.constant 0.000000e+00 : f32
    %61 = vector.broadcast %cst_42 : f32 to vector<1x16xf32>
    %62 = arith.maximumf %60, %61 : vector<1x16xf32>
    %c0_43 = arith.constant 0 : index
    %c0_44 = arith.constant 0 : index
    %63 = vector.load %arg5[%c0_43, %c0_44] : memref<16x128xf32, #tpu.memory_space<vmem>>, vector<16x128xf32>
    %cst_45 = arith.constant dense<0.000000e+00> : vector<1x128xf32>
    %64 = tpu.matmul %62, %63, %cst_45 {dimension_numbers = #tpu.dot_dimension_numbers<[1], [0], [0], [1], [0, 0, 1, 1], [], []>} : vector<1x16xf32>, vector<16x128xf32>, vector<1x128xf32> -> vector<1x128xf32>
    %c6 = arith.constant 6 : index
    %c0_46 = arith.constant 0 : index
    %65 = vector.load %arg6[%c6, %c0_46] : memref<7x128xf32, #tpu.memory_space<vmem>>, vector<1x128xf32>
    %66 = arith.addf %64, %65 : vector<1x128xf32>
    %c0_47 = arith.constant 0 : index
    %c0_48 = arith.constant 0 : index
    %67 = vector.load %arg7[%c0_47, %c0_48] : memref<1x128xf32, #tpu.memory_space<vmem>>, vector<1x128xf32>
    tpu.vector_store %arg7[%c0_47, %c0_48], %66 {strides = array<i32>} : memref<1x128xf32, #tpu.memory_space<vmem>>, vector<1x128xf32>,
    return
  }
}

</mosaic_0001>

<llo_original>
// kernel: _forward.1
$region0: #{_forward.1}
  #allocation0 [shape = 'u32[]', space=smem, size = 0x4, offset = 0x4, fixed_abs, tag = 'smem constant byte address 0x4 - core index']
  #allocation1 [shape = 'u32[144,128]{1,0:T(1,128)}', space=vmem, size = 0x12000, scoped, tag = 'internal scratch']
  %s0 = inlined_call_operand.vmem [shape: bf16[16,16], index: 0, kind: input, shape index: {}]
  %s1 = inlined_call_operand.vmem [shape: bf16[16,4], index: 1, kind: input, shape index: {}]
  %s2 = inlined_call_operand.vmem [shape: bf16[4,32], index: 2, kind: input, shape index: {}]
  %s3 = inlined_call_operand.vmem [shape: bf16[4,32,32], index: 3, kind: input, shape index: {}]
  %s4 = inlined_call_operand.vmem [shape: f32[32,16], index: 4, kind: input, shape index: {}]
  %s5 = inlined_call_operand.vmem [shape: f32[16,128], index: 5, kind: input, shape index: {}]
  %s6 = inlined_call_operand.vmem [shape: f32[7,128], index: 6, kind: input, shape index: {}]
  %s7 = inlined_call_operand.hbm [shape: f32[1,128], index: 7, kind: output, shape index: {}]
  %s8 = sld [smem:[#allocation0]]
  $region38: #{_forward.1} parent=0
    _
  %s10 = ssub.s32 1, %s8
  %s11 = scalar_select 0, %s10, %s8
  $region1: #{_forward.1} parent=0
    #allocation2 [shape = 'u8[512]{0}', space=vmem, size = 0x400, scoped, tag = 'output window, operand 0, single buffered']
    #allocation3 [shape = 's32[1]{0}', space=sflag, size = 0x4, scoped, tag = 'scoped memory for _forward.1']
    %12 = vsyncpa [#allocation3], 0
    // Predicated region
    $region2: #{_forward.1} parent=1 // pred_check
      _
    $region3: #{_forward.1} parent=1 // pred_check_branch
      %14 = sbr.rel (0) target = $region5
    $region4: #{_forward.1} parent=1 // pred_region
      _
    $region5: #{_forward.1} parent=1 // pred_fallthru
      _
    // Predicated region
    $region6: #{_forward.1} parent=1 // pred_check
      _
    $region7: #{_forward.1} parent=1 // pred_check_branch
      %16 = sbr.rel (0) target = $region9
    $region8: #{_forward.1} parent=1 // pred_region
      _
    $region9: #{_forward.1} parent=1 // pred_fallthru
      _
    // Predicated region
    $region10: #{_forward.1} parent=1 // pred_check
      _
    $region11: #{_forward.1} parent=1 // pred_check_branch
      %18 = sbr.rel (0) target = $region13
    $region12: #{_forward.1} parent=1 // pred_region
      _
    $region13: #{_forward.1} parent=1 // pred_fallthru
      _
    // Predicated region
    $region14: #{_forward.1} parent=1 // pred_check
      _
    $region15: #{_forward.1} parent=1 // pred_check_branch
      %20 = sbr.rel (0) target = $region17
    $region16: #{_forward.1} parent=1 // pred_region
      _
    $region17: #{_forward.1} parent=1 // pred_fallthru
      _
    // Predicated region
    $region18: #{_forward.1} parent=1 // pred_check
      _
    $region19: #{_forward.1} parent=1 // pred_check_branch
      %22 = sbr.rel (0) target = $region21
    $region20: #{_forward.1} parent=1 // pred_region
      _
    $region21: #{_forward.1} parent=1 // pred_fallthru
      _
    // Predicated region
    $region22: #{_forward.1} parent=1 // pred_check
      _
    $region23: #{_forward.1} parent=1 // pred_check_branch
      %24 = sbr.rel (0) target = $region25
    $region24: #{_forward.1} parent=1 // pred_region
      _
    $region25: #{_forward.1} parent=1 // pred_fallthru
      _
    // Predicated region
    $region26: #{_forward.1} parent=1 // pred_check
      _
    $region27: #{_forward.1} parent=1 // pred_check_branch
      %26 = sbr.rel (0) target = $region29
    $region28: #{_forward.1} parent=1 // pred_region
      _
    $region29: #{_forward.1} parent=1 // pred_fallthru
      _
    %v28 = vld [vmem:[%s0] sm:$0xf]
    %v29 = vld [vmem:[%s0 + $0x4] sm:$0xf]
    %v30 = vld [vmem:[%s1] sm:$0xf]
    %v31 = vld [vmem:[%s1 + $0x4] sm:$0xf]
    %v34 = vunpack.c.l.b16 %v28
    %v35 = vunpack.c.l.b16 %v29
    %v36 = vpack.c.b16 %v35, %v34
    %v39 = vunpack.c.l.b16 %v30
    %v40 = vunpack.c.l.b16 %v31
    %v41 = vpack.c.b16 %v40, %v39
    %vm43 = vcmask 130048
    %v45 = vsel %vm43, %v36, 0
    %47 = vmatprep.subr.bf16.mxu0 0
    %48 = vmatpush1.bf16.msra.mxu0 %v41
    %49 = vmatprep.subr.bf16.mxu0 0
    %50 = vmatpush1.bf16.msra.mxu0 0
    %51 = vmatprep.subr.bf16.mxu0 0
    %52 = vmatpush1.bf16.msra.mxu0 0
    %53 = vmatprep.subr.bf16.mxu0 0
    %54 = vmatpush1.bf16.msra.mxu0 0
    %55 = vmatprep.subr.bf16.mxu0 0
    %56 = vmatpush1.bf16.msra.mxu0 0
    %57 = vmatprep.subr.bf16.mxu0 0
    %58 = vmatpush1.bf16.msra.mxu0 0
    %59 = vmatprep.subr.bf16.mxu0 0
    %60 = vmatpush1.bf16.msra.mxu0 0
    %61 = vmatprep.subr.bf16.mxu0 0
    %62 = vmatpush1.bf16.msra.mxu0 0
    %63 = vmatprep.subr.bf16.mxu0 0
    %64 = vmatpush1.bf16.msra.mxu0 0
    %65 = vmatprep.subr.bf16.mxu0 0
    %66 = vmatpush1.bf16.msra.mxu0 0
    %67 = vmatprep.subr.bf16.mxu0 0
    %68 = vmatpush1.bf16.msra.mxu0 0
    %69 = vmatprep.subr.bf16.mxu0 0
    %70 = vmatpush1.bf16.msra.mxu0 0
    %71 = vmatprep.subr.bf16.mxu0 0
    %72 = vmatpush1.bf16.msra.mxu0 0
    %73 = vmatprep.subr.bf16.mxu0 0
    %74 = vmatpush1.bf16.msra.mxu0 0
    %75 = vmatprep.subr.bf16.mxu0 0
    %76 = vmatpush1.bf16.msra.mxu0 0
    %77 = vmatprep.subr.bf16.mxu0 0
    %78 = vmatpush1.bf16.msra.mxu0 0
    %79 = vmatprep.mubr.bf16.mxu0 0
    %80 = vmatmul.mubr.bf16.gmra.mrb[0].mxu0 %v45
    %v81 = vpop.f32.mrb[0].mxu0
    %v82 = vadd.f32 0.0, %v81
    %v83 = vpop.f32.mrb[0].mxu0
    %v84 = vpop.f32.mrb[0].mxu0
    %v85 = vadd.f32 0.0, %v84
    %v86 = vpop.f32.mrb[0].mxu0
    %87 = vdwg.mxu0
    %v88 = vpack.c.bf16 %v85, %v82
    %v89 = vld [vmem:[%s2] sm:$0x3]
    %v90 = vld [vmem:[%s6] sm:$0x1]
    %v91 = vlaneseq
    %v92 = vshrl.u32 %v91, 7
    %v93 = vsub.s32 0, %v92
    %v94 = vrot.slane %v90, %v93
    %vm95 = vcmask 31744
    %v97 = vsel %vm95, %v88, 0
    %vm99 = vcmask 1041408
    %v101 = vsel %vm99, %v89, 0
    %103 = vmatprep.subr.bf16.mxu0 0
    %104 = vmatpush1.bf16.msra.mxu0 %v101
    %105 = vmatprep.subr.bf16.mxu0 0
    %106 = vmatpush1.bf16.msra.mxu0 0
    %107 = vmatprep.subr.bf16.mxu0 0
    %108 = vmatpush1.bf16.msra.mxu0 0
    %109 = vmatprep.subr.bf16.mxu0 0
    %110 = vmatpush1.bf16.msra.mxu0 0
    %111 = vmatprep.subr.bf16.mxu0 0
    %112 = vmatpush1.bf16.msra.mxu0 0
    %113 = vmatprep.subr.bf16.mxu0 0
    %114 = vmatpush1.bf16.msra.mxu0 0
    %115 = vmatprep.subr.bf16.mxu0 0
    %116 = vmatpush1.bf16.msra.mxu0 0
    %117 = vmatprep.subr.bf16.mxu0 0
    %118 = vmatpush1.bf16.msra.mxu0 0
    %119 = vmatprep.subr.bf16.mxu0 0
    %120 = vmatpush1.bf16.msra.mxu0 0
    %121 = vmatprep.subr.bf16.mxu0 0
    %122 = vmatpush1.bf16.msra.mxu0 0
    %123 = vmatprep.subr.bf16.mxu0 0
    %124 = vmatpush1.bf16.msra.mxu0 0
    %125 = vmatprep.subr.bf16.mxu0 0
    %126 = vmatpush1.bf16.msra.mxu0 0
    %127 = vmatprep.subr.bf16.mxu0 0
    %128 = vmatpush1.bf16.msra.mxu0 0
    %129 = vmatprep.subr.bf16.mxu0 0
    %130 = vmatpush1.bf16.msra.mxu0 0
    %131 = vmatprep.subr.bf16.mxu0 0
    %132 = vmatpush1.bf16.msra.mxu0 0
    %133 = vmatprep.subr.bf16.mxu0 0
    %134 = vmatpush1.bf16.msra.mxu0 0
    %135 = vmatprep.mubr.bf16.mxu0 0
    %136 = vmatmul.mubr.bf16.gmra.mrb[0].mxu0 %v97
    %v137 = vpop.f32.mrb[0].mxu0
    %v138 = vadd.f32 %v94, %v137
    %v139 = vpop.f32.mrb[0].mxu0
    %v140 = vpop.f32.mrb[0].mxu0
    %v141 = vadd.f32 %v94, %v140
    %v142 = vpop.f32.mrb[0].mxu0
    %143 = vdwg.mxu0
    %v144 = vmax.f32 %v138, 0.0
    %v145 = vmax.f32 %v141, 0.0
    %v146 = vpack.c.bf16 %v145, %v144
    %v147 = vld [vmem:[%s3] sm:$0xf]
    %v148 = vld [vmem:[%s3 + $0x4] sm:$0xf]
    %v149 = vld [vmem:[%s3 + $0x8] sm:$0xf]
    %v150 = vld [vmem:[%s3 + $0xc] sm:$0xf]
    %v155 = vunpack.c.l.b16 %v147
    %v156 = vunpack.c.l.b16 %v148
    %v157 = vunpack.c.l.b16 %v149
    %v158 = vunpack.c.l.b16 %v150
    %v159 = vpack.c.b16 %v156, %v155
    %v160 = vpack.c.b16 %v158, %v157
    %vm163 = vcmask 261120
    %v165 = vsel %vm163, %v146, 0
    %167 = vmatprep.subr.bf16.mxu0 0
    %168 = vmatpush1.bf16.msra.mxu0 %v159
    %169 = vmatprep.subr.bf16.mxu0 0
    %170 = vmatpush1.bf16.msra.mxu0 %v160
    %171 = vmatprep.subr.bf16.mxu0 0
    %172 = vmatpush1.bf16.msra.mxu0 0
    %173 = vmatprep.subr.bf16.mxu0 0
    %174 = vmatpush1.bf16.msra.mxu0 0
    %175 = vmatprep.subr.bf16.mxu0 0
    %176 = vmatpush1.bf16.msra.mxu0 0
    %177 = vmatprep.subr.bf16.mxu0 0
    %178 = vmatpush1.bf16.msra.mxu0 0
    %179 = vmatprep.subr.bf16.mxu0 0
    %180 = vmatpush1.bf16.msra.mxu0 0
    %181 = vmatprep.subr.bf16.mxu0 0
    %182 = vmatpush1.bf16.msra.mxu0 0
    %183 = vmatprep.subr.bf16.mxu0 0
    %184 = vmatpush1.bf16.msra.mxu0 0
    %185 = vmatprep.subr.bf16.mxu0 0
    %186 = vmatpush1.bf16.msra.mxu0 0
    %187 = vmatprep.subr.bf16.mxu0 0
    %188 = vmatpush1.bf16.msra.mxu0 0
    %189 = vmatprep.subr.bf16.mxu0 0
    %190 = vmatpush1.bf16.msra.mxu0 0
    %191 = vmatprep.subr.bf16.mxu0 0
    %192 = vmatpush1.bf16.msra.mxu0 0
    %193 = vmatprep.subr.bf16.mxu0 0
    %194 = vmatpush1.bf16.msra.mxu0 0
    %195 = vmatprep.subr.bf16.mxu0 0
    %196 = vmatpush1.bf16.msra.mxu0 0
    %197 = vmatprep.subr.bf16.mxu0 0
    %198 = vmatpush1.bf16.msra.mxu0 0
    %199 = vmatprep.mubr.bf16.mxu0 0
    %200 = vmatmul.mubr.bf16.gmra.mrb[0].mxu0 %v165
    %v201 = vpop.f32.mrb[0].mxu0
    %v202 = vadd.f32 0.0, %v201
    %v203 = vpop.f32.mrb[0].mxu0
    %v204 = vpop.f32.mrb[0].mxu0
    %v205 = vadd.f32 0.0, %v204
    %v206 = vpop.f32.mrb[0].mxu0
    %207 = vdwg.mxu0
    %v208 = vpack.c.bf16 %v205, %v202
    %v209 = vld [vmem:[%s6 + $0x1] sm:$0x1]
    %v210 = vlaneseq
    %v211 = vshrl.u32 %v210, 7
    %v212 = vsub.s32 0, %v211
    %v213 = vrot.slane %v209, %v212
    %214 = vmatprep.subr.bf16.mxu0 0
    %215 = vmatpush1.bf16.msra.mxu0 %v208
    %216 = vmatprep.subr.bf16.mxu0 0
    %217 = vmatpush1.bf16.msra.mxu0 0
    %218 = vmatprep.subr.bf16.mxu0 0
    %219 = vmatpush1.bf16.msra.mxu0 0
    %220 = vmatprep.subr.bf16.mxu0 0
    %221 = vmatpush1.bf16.msra.mxu0 0
    %222 = vmatprep.subr.bf16.mxu0 0
    %223 = vmatpush1.bf16.msra.mxu0 0
    %224 = vmatprep.subr.bf16.mxu0 0
    %225 = vmatpush1.bf16.msra.mxu0 0
    %226 = vmatprep.subr.bf16.mxu0 0
    %227 = vmatpush1.bf16.msra.mxu0 0
    %228 = vmatprep.subr.bf16.mxu0 0
    %229 = vmatpush1.bf16.msra.mxu0 0
    %230 = vmatprep.subr.bf16.mxu0 0
    %231 = vmatpush1.bf16.msra.mxu0 0
    %232 = vmatprep.subr.bf16.mxu0 0
    %233 = vmatpush1.bf16.msra.mxu0 0
    %234 = vmatprep.subr.bf16.mxu0 0
    %235 = vmatpush1.bf16.msra.mxu0 0
    %236 = vmatprep.subr.bf16.mxu0 0
    %237 = vmatpush1.bf16.msra.mxu0 0
    %238 = vmatprep.subr.bf16.mxu0 0
    %239 = vmatpush1.bf16.msra.mxu0 0
    %240 = vmatprep.subr.bf16.mxu0 0
    %241 = vmatpush1.bf16.msra.mxu0 0
    %242 = vmatprep.subr.bf16.mxu0 0
    %243 = vmatpush1.bf16.msra.mxu0 0
    %244 = vmatprep.subr.bf16.mxu0 0
    %245 = vmatpush1.bf16.msra.mxu0 0
    %246 = vmatprep.mubr.bf16.mxu0 0
    %247 = vmatmul.mubr.bf16.gmra.mrb[0].mxu0 %v45
    %v248 = vpop.f32.mrb[0].mxu0
    %v249 = vadd.f32 %v213, %v248
    %v250 = vpop.f32.mrb[0].mxu0
    %v251 = vpop.f32.mrb[0].mxu0
    %v252 = vadd.f32 %v213, %v251
    %v253 = vpop.f32.mrb[0].mxu0
    %254 = vdwg.mxu0
    %v255 = vmax.f32 %v249, 0.0
    %v256 = vmax.f32 %v252, 0.0
    %v257 = vpack.c.bf16 %v256, %v255
    %s258 = scalar_lea.vmem %s3, 16
    %v259 = vld [vmem:[%s258] sm:$0xf]
    %v260 = vld [vmem:[%s258 + $0x4] sm:$0xf]
    %v261 = vld [vmem:[%s258 + $0x8] sm:$0xf]
    %v262 = vld [vmem:[%s258 + $0xc] sm:$0xf]
    %v267 = vunpack.c.l.b16 %v259
    %v268 = vunpack.c.l.b16 %v260
    %v269 = vunpack.c.l.b16 %v261
    %v270 = vunpack.c.l.b16 %v262
    %v271 = vpack.c.b16 %v268, %v267
    %v272 = vpack.c.b16 %v270, %v269
    %v276 = vsel %vm163, %v257, 0
    %278 = vmatprep.subr.bf16.mxu0 0
    %279 = vmatpush1.bf16.msra.mxu0 %v271
    %280 = vmatprep.subr.bf16.mxu0 0
    %281 = vmatpush1.bf16.msra.mxu0 %v272
    %282 = vmatprep.subr.bf16.mxu0 0
    %283 = vmatpush1.bf16.msra.mxu0 0
    %284 = vmatprep.subr.bf16.mxu0 0
    %285 = vmatpush1.bf16.msra.mxu0 0
    %286 = vmatprep.subr.bf16.mxu0 0
    %287 = vmatpush1.bf16.msra.mxu0 0
    %288 = vmatprep.subr.bf16.mxu0 0
    %289 = vmatpush1.bf16.msra.mxu0 0
    %290 = vmatprep.subr.bf16.mxu0 0
    %291 = vmatpush1.bf16.msra.mxu0 0
    %292 = vmatprep.subr.bf16.mxu0 0
    %293 = vmatpush1.bf16.msra.mxu0 0
    %294 = vmatprep.subr.bf16.mxu0 0
    %295 = vmatpush1.bf16.msra.mxu0 0
    %296 = vmatprep.subr.bf16.mxu0 0
    %297 = vmatpush1.bf16.msra.mxu0 0
    %298 = vmatprep.subr.bf16.mxu0 0
    %299 = vmatpush1.bf16.msra.mxu0 0
    %300 = vmatprep.subr.bf16.mxu0 0
    %301 = vmatpush1.bf16.msra.mxu0 0
    %302 = vmatprep.subr.bf16.mxu0 0
    %303 = vmatpush1.bf16.msra.mxu0 0
    %304 = vmatprep.subr.bf16.mxu0 0
    %305 = vmatpush1.bf16.msra.mxu0 0
    %306 = vmatprep.subr.bf16.mxu0 0
    %307 = vmatpush1.bf16.msra.mxu0 0
    %308 = vmatprep.subr.bf16.mxu0 0
    %309 = vmatpush1.bf16.msra.mxu0 0
    %310 = vmatprep.mubr.bf16.mxu0 0
    %311 = vmatmul.mubr.bf16.gmra.mrb[0].mxu0 %v276
    %v312 = vpop.f32.mrb[0].mxu0
    %v313 = vadd.f32 0.0, %v312
    %v314 = vpop.f32.mrb[0].mxu0
    %v315 = vpop.f32.mrb[0].mxu0
    %v316 = vadd.f32 0.0, %v315
    %v317 = vpop.f32.mrb[0].mxu0
    %318 = vdwg.mxu0
    %v319 = vpack.c.bf16 %v316, %v313
    %v320 = vld [vmem:[%s6 + $0x2] sm:$0x1]
    %v321 = vlaneseq
    %v322 = vshrl.u32 %v321, 7
    %v323 = vsub.s32 0, %v322
    %v324 = vrot.slane %v320, %v323
    %325 = vmatprep.subr.bf16.mxu0 0
    %326 = vmatpush1.bf16.msra.mxu0 %v319
    %327 = vmatprep.subr.bf16.mxu0 0
    %328 = vmatpush1.bf16.msra.mxu0 0
    %329 = vmatprep.subr.bf16.mxu0 0
    %330 = vmatpush1.bf16.msra.mxu0 0
    %331 = vmatprep.subr.bf16.mxu0 0
    %332 = vmatpush1.bf16.msra.mxu0 0
    %333 = vmatprep.subr.bf16.mxu0 0
    %334 = vmatpush1.bf16.msra.mxu0 0
    %335 = vmatprep.subr.bf16.mxu0 0
    %336 = vmatpush1.bf16.msra.mxu0 0
    %337 = vmatprep.subr.bf16.mxu0 0
    %338 = vmatpush1.bf16.msra.mxu0 0
    %339 = vmatprep.subr.bf16.mxu0 0
    %340 = vmatpush1.bf16.msra.mxu0 0
    %341 = vmatprep.subr.bf16.mxu0 0
    %342 = vmatpush1.bf16.msra.mxu0 0
    %343 = vmatprep.subr.bf16.mxu0 0
    %344 = vmatpush1.bf16.msra.mxu0 0
    %345 = vmatprep.subr.bf16.mxu0 0
    %346 = vmatpush1.bf16.msra.mxu0 0
    %347 = vmatprep.subr.bf16.mxu0 0
    %348 = vmatpush1.bf16.msra.mxu0 0
    %349 = vmatprep.subr.bf16.mxu0 0
    %350 = vmatpush1.bf16.msra.mxu0 0
    %351 = vmatprep.subr.bf16.mxu0 0
    %352 = vmatpush1.bf16.msra.mxu0 0
    %353 = vmatprep.subr.bf16.mxu0 0
    %354 = vmatpush1.bf16.msra.mxu0 0
    %355 = vmatprep.subr.bf16.mxu0 0
    %356 = vmatpush1.bf16.msra.mxu0 0
    %357 = vmatprep.mubr.bf16.mxu0 0
    %358 = vmatmul.mubr.bf16.gmra.mrb[0].mxu0 %v45
    %v359 = vpop.f32.mrb[0].mxu0
    %v360 = vadd.f32 %v324, %v359
    %v361 = vpop.f32.mrb[0].mxu0
    %v362 = vpop.f32.mrb[0].mxu0
    %v363 = vadd.f32 %v324, %v362
    %v364 = vpop.f32.mrb[0].mxu0
    %365 = vdwg.mxu0
    %v366 = vmax.f32 %v360, 0.0
    %v367 = vmax.f32 %v363, 0.0
    %v368 = vpack.c.bf16 %v367, %v366
    %s369 = scalar_lea.vmem %s3, 32
    %v370 = vld [vmem:[%s369] sm:$0xf]
    %v371 = vld [vmem:[%s369 + $0x4] sm:$0xf]
    %v372 = vld [vmem:[%s369 + $0x8] sm:$0xf]
    %v373 = vld [vmem:[%s369 + $0xc] sm:$0xf]
    %v378 = vunpack.c.l.b16 %v370
    %v379 = vunpack.c.l.b16 %v371
    %v380 = vunpack.c.l.b16 %v372
    %v381 = vunpack.c.l.b16 %v373
    %v382 = vpack.c.b16 %v379, %v378
    %v383 = vpack.c.b16 %v381, %v380
    %v387 = vsel %vm163, %v368, 0
    %389 = vmatprep.subr.bf16.mxu0 0
    %390 = vmatpush1.bf16.msra.mxu0 %v382
    %391 = vmatprep.subr.bf16.mxu0 0
    %392 = vmatpush1.bf16.msra.mxu0 %v383
    %393 = vmatprep.subr.bf16.mxu0 0
    %394 = vmatpush1.bf16.msra.mxu0 0
    %395 = vmatprep.subr.bf16.mxu0 0
    %396 = vmatpush1.bf16.msra.mxu0 0
    %397 = vmatprep.subr.bf16.mxu0 0
    %398 = vmatpush1.bf16.msra.mxu0 0
    %399 = vmatprep.subr.bf16.mxu0 0
    %400 = vmatpush1.bf16.msra.mxu0 0
    %401 = vmatprep.subr.bf16.mxu0 0
    %402 = vmatpush1.bf16.msra.mxu0 0
    %403 = vmatprep.subr.bf16.mxu0 0
    %404 = vmatpush1.bf16.msra.mxu0 0
    %405 = vmatprep.subr.bf16.mxu0 0
    %406 = vmatpush1.bf16.msra.mxu0 0
    %407 = vmatprep.subr.bf16.mxu0 0
    %408 = vmatpush1.bf16.msra.mxu0 0
    %409 = vmatprep.subr.bf16.mxu0 0
    %410 = vmatpush1.bf16.msra.mxu0 0
    %411 = vmatprep.subr.bf16.mxu0 0
    %412 = vmatpush1.bf16.msra.mxu0 0
    %413 = vmatprep.subr.bf16.mxu0 0
    %414 = vmatpush1.bf16.msra.mxu0 0
    %415 = vmatprep.subr.bf16.mxu0 0
    %416 = vmatpush1.bf16.msra.mxu0 0
    %417 = vmatprep.subr.bf16.mxu0 0
    %418 = vmatpush1.bf16.msra.mxu0 0
    %419 = vmatprep.subr.bf16.mxu0 0
    %420 = vmatpush1.bf16.msra.mxu0 0
    %421 = vmatprep.mubr.bf16.mxu0 0
    %422 = vmatmul.mubr.bf16.gmra.mrb[0].mxu0 %v387
    %v423 = vpop.f32.mrb[0].mxu0
    %v424 = vadd.f32 0.0, %v423
    %v425 = vpop.f32.mrb[0].mxu0
    %v426 = vpop.f32.mrb[0].mxu0
    %v427 = vadd.f32 0.0, %v426
    %v428 = vpop.f32.mrb[0].mxu0
    %429 = vdwg.mxu0
    %v430 = vpack.c.bf16 %v427, %v424
    %v431 = vld [vmem:[%s6 + $0x3] sm:$0x1]
    %v432 = vlaneseq
    %v433 = vshrl.u32 %v432, 7
    %v434 = vsub.s32 0, %v433
    %v435 = vrot.slane %v431, %v434
    %436 = vmatprep.subr.bf16.mxu0 0
    %437 = vmatpush1.bf16.msra.mxu0 %v430
    %438 = vmatprep.subr.bf16.mxu0 0
    %439 = vmatpush1.bf16.msra.mxu0 0
    %440 = vmatprep.subr.bf16.mxu0 0
    %441 = vmatpush1.bf16.msra.mxu0 0
    %442 = vmatprep.subr.bf16.mxu0 0
    %443 = vmatpush1.bf16.msra.mxu0 0
    %444 = vmatprep.subr.bf16.mxu0 0
    %445 = vmatpush1.bf16.msra.mxu0 0
    %446 = vmatprep.subr.bf16.mxu0 0
    %447 = vmatpush1.bf16.msra.mxu0 0
    %448 = vmatprep.subr.bf16.mxu0 0
    %449 = vmatpush1.bf16.msra.mxu0 0
    %450 = vmatprep.subr.bf16.mxu0 0
    %451 = vmatpush1.bf16.msra.mxu0 0
    %452 = vmatprep.subr.bf16.mxu0 0
    %453 = vmatpush1.bf16.msra.mxu0 0
    %454 = vmatprep.subr.bf16.mxu0 0
    %455 = vmatpush1.bf16.msra.mxu0 0
    %456 = vmatprep.subr.bf16.mxu0 0
    %457 = vmatpush1.bf16.msra.mxu0 0
    %458 = vmatprep.subr.bf16.mxu0 0
    %459 = vmatpush1.bf16.msra.mxu0 0
    %460 = vmatprep.subr.bf16.mxu0 0
    %461 = vmatpush1.bf16.msra.mxu0 0
    %462 = vmatprep.subr.bf16.mxu0 0
    %463 = vmatpush1.bf16.msra.mxu0 0
    %464 = vmatprep.subr.bf16.mxu0 0
    %465 = vmatpush1.bf16.msra.mxu0 0
    %466 = vmatprep.subr.bf16.mxu0 0
    %467 = vmatpush1.bf16.msra.mxu0 0
    %468 = vmatprep.mubr.bf16.mxu0 0
    %469 = vmatmul.mubr.bf16.gmra.mrb[0].mxu0 %v45
    %v470 = vpop.f32.mrb[0].mxu0
    %v471 = vadd.f32 %v435, %v470
    %v472 = vpop.f32.mrb[0].mxu0
    %v473 = vpop.f32.mrb[0].mxu0
    %v474 = vadd.f32 %v435, %v473
    %v475 = vpop.f32.mrb[0].mxu0
    %476 = vdwg.mxu0
    %v477 = vmax.f32 %v471, 0.0
    %v478 = vmax.f32 %v474, 0.0
    %v479 = vpack.c.bf16 %v478, %v477
    %s480 = scalar_lea.vmem %s3, 48
    %v481 = vld [vmem:[%s480] sm:$0xf]
    %v482 = vld [vmem:[%s480 + $0x4] sm:$0xf]
    %v483 = vld [vmem:[%s480 + $0x8] sm:$0xf]
    %v484 = vld [vmem:[%s480 + $0xc] sm:$0xf]
    %v489 = vunpack.c.l.b16 %v481
    %v490 = vunpack.c.l.b16 %v482
    %v491 = vunpack.c.l.b16 %v483
    %v492 = vunpack.c.l.b16 %v484
    %v493 = vpack.c.b16 %v490, %v489
    %v494 = vpack.c.b16 %v492, %v491
    %v498 = vsel %vm163, %v479, 0
    %500 = vmatprep.subr.bf16.mxu0 0
    %501 = vmatpush1.bf16.msra.mxu0 %v493
    %502 = vmatprep.subr.bf16.mxu0 0
    %503 = vmatpush1.bf16.msra.mxu0 %v494
    %504 = vmatprep.subr.bf16.mxu0 0
    %505 = vmatpush1.bf16.msra.mxu0 0
    %506 = vmatprep.subr.bf16.mxu0 0
    %507 = vmatpush1.bf16.msra.mxu0 0
    %508 = vmatprep.subr.bf16.mxu0 0
    %509 = vmatpush1.bf16.msra.mxu0 0
    %510 = vmatprep.subr.bf16.mxu0 0
    %511 = vmatpush1.bf16.msra.mxu0 0
    %512 = vmatprep.subr.bf16.mxu0 0
    %513 = vmatpush1.bf16.msra.mxu0 0
    %514 = vmatprep.subr.bf16.mxu0 0
    %515 = vmatpush1.bf16.msra.mxu0 0
    %516 = vmatprep.subr.bf16.mxu0 0
    %517 = vmatpush1.bf16.msra.mxu0 0
    %518 = vmatprep.subr.bf16.mxu0 0
    %519 = vmatpush1.bf16.msra.mxu0 0
    %520 = vmatprep.subr.bf16.mxu0 0
    %521 = vmatpush1.bf16.msra.mxu0 0
    %522 = vmatprep.subr.bf16.mxu0 0
    %523 = vmatpush1.bf16.msra.mxu0 0
    %524 = vmatprep.subr.bf16.mxu0 0
    %525 = vmatpush1.bf16.msra.mxu0 0
    %526 = vmatprep.subr.bf16.mxu0 0
    %527 = vmatpush1.bf16.msra.mxu0 0
    %528 = vmatprep.subr.bf16.mxu0 0
    %529 = vmatpush1.bf16.msra.mxu0 0
    %530 = vmatprep.subr.bf16.mxu0 0
    %531 = vmatpush1.bf16.msra.mxu0 0
    %532 = vmatprep.mubr.bf16.mxu0 0
    %533 = vmatmul.mubr.bf16.gmra.mrb[0].mxu0 %v498
    %v534 = vpop.f32.mrb[0].mxu0
    %v535 = vadd.f32 0.0, %v534
    %v536 = vpop.f32.mrb[0].mxu0
    %v537 = vpop.f32.mrb[0].mxu0
    %v538 = vadd.f32 0.0, %v537
    %v539 = vpop.f32.mrb[0].mxu0
    %540 = vdwg.mxu0
    %v541 = vpack.c.bf16 %v538, %v535
    %v542 = vld [vmem:[%s6 + $0x4] sm:$0x1]
    %v543 = vlaneseq
    %v544 = vshrl.u32 %v543, 7
    %v545 = vsub.s32 0, %v544
    %v546 = vrot.slane %v542, %v545
    %547 = vmatprep.subr.bf16.mxu0 0
    %548 = vmatpush1.bf16.msra.mxu0 %v541
    %549 = vmatprep.subr.bf16.mxu0 0
    %550 = vmatpush1.bf16.msra.mxu0 0
    %551 = vmatprep.subr.bf16.mxu0 0
    %552 = vmatpush1.bf16.msra.mxu0 0
    %553 = vmatprep.subr.bf16.mxu0 0
    %554 = vmatpush1.bf16.msra.mxu0 0
    %555 = vmatprep.subr.bf16.mxu0 0
    %556 = vmatpush1.bf16.msra.mxu0 0
    %557 = vmatprep.subr.bf16.mxu0 0
    %558 = vmatpush1.bf16.msra.mxu0 0
    %559 = vmatprep.subr.bf16.mxu0 0
    %560 = vmatpush1.bf16.msra.mxu0 0
    %561 = vmatprep.subr.bf16.mxu0 0
    %562 = vmatpush1.bf16.msra.mxu0 0
    %563 = vmatprep.subr.bf16.mxu0 0
    %564 = vmatpush1.bf16.msra.mxu0 0
    %565 = vmatprep.subr.bf16.mxu0 0
    %566 = vmatpush1.bf16.msra.mxu0 0
    %567 = vmatprep.subr.bf16.mxu0 0
    %568 = vmatpush1.bf16.msra.mxu0 0
    %569 = vmatprep.subr.bf16.mxu0 0
    %570 = vmatpush1.bf16.msra.mxu0 0
    %571 = vmatprep.subr.bf16.mxu0 0
    %572 = vmatpush1.bf16.msra.mxu0 0
    %573 = vmatprep.subr.bf16.mxu0 0
    %574 = vmatpush1.bf16.msra.mxu0 0
    %575 = vmatprep.subr.bf16.mxu0 0
    %576 = vmatpush1.bf16.msra.mxu0 0
    %577 = vmatprep.subr.bf16.mxu0 0
    %578 = vmatpush1.bf16.msra.mxu0 0
    %579 = vmatprep.mubr.bf16.mxu0 0
    %580 = vmatmul.mubr.bf16.gmra.mrb[0].mxu0 %v45
    %v581 = vpop.f32.mrb[0].mxu0
    %v582 = vadd.f32 %v546, %v581
    %v583 = vpop.f32.mrb[0].mxu0
    %v584 = vpop.f32.mrb[0].mxu0
    %v585 = vadd.f32 %v546, %v584
    %v586 = vpop.f32.mrb[0].mxu0
    %587 = vdwg.mxu0
    %v588 = vmax.f32 %v582, 0.0
    %v589 = vmax.f32 %v585, 0.0
    %v590 = vsel %vm163, %v588, -inf
    %v591 = vsel %vm163, %v589, -inf
    %v592 = vmax.f32 %v590, %v591
    %v593 = vrot.slane %v592, 4
    %v594 = vmax.f32 %v592, %v593
    %v595 = vrot.slane %v594, 2
    %v596 = vmax.f32 %v594, %v595
    %v597 = vrot.slane %v596, 1
    %v598 = vmax.f32 %v596, %v597
    %v599 = vld [vmem:[%s4] sm:$0xff]
    %v600 = vld [vmem:[%s4 + $0x8] sm:$0xff]
    %v601 = vld [vmem:[%s4 + $0x10] sm:$0xff]
    %v602 = vld [vmem:[%s4 + $0x18] sm:$0xff]
    %v603 = vld [vmem:[%s6 + $0x5] sm:$0x1]
    %v605 = vsel %vm163, %v598, 0
    %607 = vmatprep.subr.mxu0 0.0
    %608 = vmatpush1.msra.mxu0 %v599
    %609 = vmatprep.subr.mxu0 0.0
    %610 = vmatpush1.msra.mxu0 %v600
    %611 = vmatprep.subr.mxu0 0.0
    %612 = vmatpush1.msra.mxu0 %v601
    %613 = vmatprep.subr.mxu0 0.0
    %614 = vmatpush1.msra.mxu0 %v602
    %615 = vmatprep.subr.mxu0 0.0
    %616 = vmatpush1.msra.mxu0 0.0
    %617 = vmatprep.subr.mxu0 0.0
    %618 = vmatpush1.msra.mxu0 0.0
    %619 = vmatprep.subr.mxu0 0.0
    %620 = vmatpush1.msra.mxu0 0.0
    %621 = vmatprep.subr.mxu0 0.0
    %622 = vmatpush1.msra.mxu0 0.0
    %623 = vmatprep.subr.mxu0 0.0
    %624 = vmatpush1.msra.mxu0 0.0
    %625 = vmatprep.subr.mxu0 0.0
    %626 = vmatpush1.msra.mxu0 0.0
    %627 = vmatprep.subr.mxu0 0.0
    %628 = vmatpush1.msra.mxu0 0.0
    %629 = vmatprep.subr.mxu0 0.0
    %630 = vmatpush1.msra.mxu0 0.0
    %631 = vmatprep.subr.mxu0 0.0
    %632 = vmatpush1.msra.mxu0 0.0
    %633 = vmatprep.subr.mxu0 0.0
    %634 = vmatpush1.msra.mxu0 0.0
    %635 = vmatprep.subr.mxu0 0.0
    %636 = vmatpush1.msra.mxu0 0.0
    %637 = vmatprep.subr.mxu0 0.0
    %638 = vmatpush1.msra.mxu0 0.0
    %639 = vmatprep.subr.mxu0 0.0
    %640 = vmatpush1.msra.mxu0 0.0
    %641 = vmatprep.subr.mxu0 0.0
    %642 = vmatpush1.msra.mxu0 0.0
    %643 = vmatprep.subr.mxu0 0.0
    %644 = vmatpush1.msra.mxu0 0.0
    %645 = vmatprep.subr.mxu0 0.0
    %646 = vmatpush1.msra.mxu0 0.0
    %647 = vmatprep.subr.mxu0 0.0
    %648 = vmatpush1.msra.mxu0 0.0
    %649 = vmatprep.subr.mxu0 0.0
    %650 = vmatpush1.msra.mxu0 0.0
    %651 = vmatprep.subr.mxu0 0.0
    %652 = vmatpush1.msra.mxu0 0.0
    %653 = vmatprep.subr.mxu0 0.0
    %654 = vmatpush1.msra.mxu0 0.0
    %655 = vmatprep.subr.mxu0 0.0
    %656 = vmatpush1.msra.mxu0 0.0
    %657 = vmatprep.subr.mxu0 0.0
    %658 = vmatpush1.msra.mxu0 0.0
    %659 = vmatprep.subr.mxu0 0.0
    %660 = vmatpush1.msra.mxu0 0.0
    %661 = vmatprep.subr.mxu0 0.0
    %662 = vmatpush1.msra.mxu0 0.0
    %663 = vmatprep.subr.mxu0 0.0
    %664 = vmatpush1.msra.mxu0 0.0
    %665 = vmatprep.subr.mxu0 0.0
    %666 = vmatpush1.msra.mxu0 0.0
    %667 = vmatprep.subr.mxu0 0.0
    %668 = vmatpush1.msra.mxu0 0.0
    %669 = vmatprep.subr.mxu0 0.0
    %670 = vmatpush1.msra.mxu0 0.0
    %671 = vmatprep.mubr.f32.mxu0 0.0
    %672 = vmatmul.mubr.f32.gmra.mrb[0].mxu0 %v605
    %v673 = vpop.f32.mrb[0].mxu0
    %v674 = vadd.f32 %v603, %v673
    %v675 = vpop.f32.mrb[0].mxu0
    %676 = vdwg.mxu0
    %v677 = vmax.f32 %v674, 0.0
    %v678 = vld [vmem:[%s5] sm:$0xff]
    %v679 = vld [vmem:[%s5 + $0x8] sm:$0xff]
    %v680 = vld [vmem:[%s6 + $0x6] sm:$0x1]
    %v682 = vsel %vm43, %v677, 0
    %684 = vmatprep.subr.mxu0 0.0
    %685 = vmatpush1.msra.mxu0 %v678
    %686 = vmatprep.subr.mxu0 0.0
    %687 = vmatpush1.msra.mxu0 %v679
    %688 = vmatprep.subr.mxu0 0.0
    %689 = vmatpush1.msra.mxu0 0.0
    %690 = vmatprep.subr.mxu0 0.0
    %691 = vmatpush1.msra.mxu0 0.0
    %692 = vmatprep.subr.mxu0 0.0
    %693 = vmatpush1.msra.mxu0 0.0
    %694 = vmatprep.subr.mxu0 0.0
    %695 = vmatpush1.msra.mxu0 0.0
    %696 = vmatprep.subr.mxu0 0.0
    %697 = vmatpush1.msra.mxu0 0.0
    %698 = vmatprep.subr.mxu0 0.0
    %699 = vmatpush1.msra.mxu0 0.0
    %700 = vmatprep.subr.mxu0 0.0
    %701 = vmatpush1.msra.mxu0 0.0
    %702 = vmatprep.subr.mxu0 0.0
    %703 = vmatpush1.msra.mxu0 0.0
    %704 = vmatprep.subr.mxu0 0.0
    %705 = vmatpush1.msra.mxu0 0.0
    %706 = vmatprep.subr.mxu0 0.0
    %707 = vmatpush1.msra.mxu0 0.0
    %708 = vmatprep.subr.mxu0 0.0
    %709 = vmatpush1.msra.mxu0 0.0
    %710 = vmatprep.subr.mxu0 0.0
    %711 = vmatpush1.msra.mxu0 0.0
    %712 = vmatprep.subr.mxu0 0.0
    %713 = vmatpush1.msra.mxu0 0.0
    %714 = vmatprep.subr.mxu0 0.0
    %715 = vmatpush1.msra.mxu0 0.0
    %716 = vmatprep.subr.mxu0 0.0
    %717 = vmatpush1.msra.mxu0 0.0
    %718 = vmatprep.subr.mxu0 0.0
    %719 = vmatpush1.msra.mxu0 0.0
    %720 = vmatprep.subr.mxu0 0.0
    %721 = vmatpush1.msra.mxu0 0.0
    %722 = vmatprep.subr.mxu0 0.0
    %723 = vmatpush1.msra.mxu0 0.0
    %724 = vmatprep.subr.mxu0 0.0
    %725 = vmatpush1.msra.mxu0 0.0
    %726 = vmatprep.subr.mxu0 0.0
    %727 = vmatpush1.msra.mxu0 0.0
    %728 = vmatprep.subr.mxu0 0.0
    %729 = vmatpush1.msra.mxu0 0.0
    %730 = vmatprep.subr.mxu0 0.0
    %731 = vmatpush1.msra.mxu0 0.0
    %732 = vmatprep.subr.mxu0 0.0
    %733 = vmatpush1.msra.mxu0 0.0
    %734 = vmatprep.subr.mxu0 0.0
    %735 = vmatpush1.msra.mxu0 0.0
    %736 = vmatprep.subr.mxu0 0.0
    %737 = vmatpush1.msra.mxu0 0.0
    %738 = vmatprep.subr.mxu0 0.0
    %739 = vmatpush1.msra.mxu0 0.0
    %740 = vmatprep.subr.mxu0 0.0
    %741 = vmatpush1.msra.mxu0 0.0
    %742 = vmatprep.subr.mxu0 0.0
    %743 = vmatpush1.msra.mxu0 0.0
    %744 = vmatprep.subr.mxu0 0.0
    %745 = vmatpush1.msra.mxu0 0.0
    %746 = vmatprep.subr.mxu0 0.0
    %747 = vmatpush1.msra.mxu0 0.0
    %748 = vmatprep.mubr.f32.mxu0 0.0
    %749 = vmatmul.mubr.f32.gmra.mrb[0].mxu0 %v682
    %v750 = vpop.f32.mrb[0].mxu0
    %v751 = vadd.f32 %v680, %v750
    %v752 = vpop.f32.mrb[0].mxu0
    %753 = vdwg.mxu0
    %754 = vst [vmem:[#allocation2] sm:$0x1] %v751
    // Predicated region
    $region30: #{_forward.1} parent=1 // pred_check
      _
    $region31: #{_forward.1} parent=1 // pred_check_branch
      %756 = sbr.rel (0) target = $region33
    $region32: #{_forward.1} parent=1 // pred_region
      %s758 = ssub.s32 16, 16
      %759 = vsyncadd [#allocation3], %s758
      %s761 = sshll.u32 [#allocation2], 4
      %s762 = int_to_ptr.vmem [resolvable:$true] %s761
      %764 = dma.vmem_to_hbm [thread:$0]  %s762, 16, %s7, [#allocation3]
    $region33: #{_forward.1} parent=1 // pred_fallthru
      _
    // Predicated region
    $region34: #{_forward.1} parent=1 // pred_check
      _
    $region35: #{_forward.1} parent=1 // pred_check_branch
      %766 = sbr.rel (0) target = $region37
    $region36: #{_forward.1} parent=1 // pred_region
      %767 = dma.done [#allocation3], 16
    $region37: #{_forward.1} parent=1 // pred_fallthru
      _
    %768 = vsyncpa [#allocation3], 1

</llo_original>
